<compile_context>
chip_gen: v5e
topology: v5e:2x2
jax: 0.10.0
libtpu: 0.0.40
codegen_flags: <defaults>
</compile_context>

<pallas_src>
import functools

import jax
import jax.numpy as jnp
from jax.experimental import pallas as pl
from jax.experimental.pallas import tpu as pltpu

NUM_CLASSES = 30
C_PAD = 128  # lane-dense output width (>= NUM_CLASSES, multiple of 128)


# --------------------------------- kernel -----------------------------------


def spinalnet_kernel(H, W, x_ref, wslab_ref, aff_ref, o_ref):
    """One batch tile of the full SpinalNet head.

    wslab_ref (bf16), all bands 128-lane aligned:
      rows [0 : 2H)             block x-side weight  [[w1 |  0  | w3x |  0 ],
                                                      [ 0 | w2x |  0  | w4x]]
                                (lanes 0:4W)
      rows [2H + i*W : +W)      hidden-part weight of layer i+2 (w2h/w3h/w4h),
                                lanes 0:W, for i = 0, 1, 2
      rows [2H+3W : 2H+7W)      fc_out weight wo (4W, NUM_CLASSES), lanes
                                0:NUM_CLASSES (zero-padded to C_PAD)
    aff_ref (f32) rows: 0-3 BN scale (lanes 0:W), 4-7 BN shift (lanes 0:W),
                        8 fc_out bias (lanes 0:C_PAD, zero beyond NUM_CLASSES).
    """
    x = x_ref[...]                                              # (tb, 2H) bf16

    # one block matmul -> [z1 | z2x | z3x | z4x]  (pre-BN x-side contributions)
    wx = wslab_ref[0:2 * H, 0:4 * W]                            # (2H, 4W) bf16
    zx = jnp.dot(x, wx, preferred_element_type=jnp.float32)     # (tb, 4W) f32

    def affine_relu(z, k):
        s = aff_ref[k:k + 1, 0:W]                               # (1, W)
        t = aff_ref[4 + k:5 + k, 0:W]                           # (1, W)
        return jnp.maximum(z * s + t, 0.0).astype(jnp.bfloat16)

    def hidden_dot(xi, i):
        # (tb, W) @ (W, W): pure hidden-part matmul (fc_out is off this chain)
        r0 = 2 * H + i * W
        return jnp.dot(xi, wslab_ref[r0:r0 + W, 0:W],
                       preferred_element_type=jnp.float32)

    # serial SpinalNet chain (4 small dependent matmuls, N = W)
    x1 = affine_relu(zx[:, 0:W], 0)
    x2 = affine_relu(zx[:, W:2 * W] + hidden_dot(x1, 0), 1)
    x3 = affine_relu(zx[:, 2 * W:3 * W] + hidden_dot(x2, 1), 2)
    x4 = affine_relu(zx[:, 3 * W:4 * W] + hidden_dot(x3, 2), 3)

    # fc_out: ONE (tb, 4W) @ (4W, C_PAD) matmul, off the serial chain
    hcat = jnp.concatenate([x1, x2, x3, x4], axis=1)            # (tb, 4W) bf16
    r0 = 2 * H + 3 * W
    wo = wslab_ref[r0:r0 + 4 * W, 0:C_PAD]                      # (4W, C_PAD)
    logits = jnp.dot(hcat, wo, preferred_element_type=jnp.float32)

    # fc_out bias; lane-dense (tb, 128) bf16 store (lanes >= NUM_CLASSES are 0)
    o_ref[...] = (logits + aff_ref[8:9, :]).astype(o_ref.dtype)


# ----------------------------- parameter prep --------------------------------


def make_params(key, half_in_size, layer_width):
    """Deterministic synthetic parameters (weights in (in, out) orientation)."""
    H, W = half_in_size, layer_width
    ks = list(jax.random.split(key, 32))
    nxt = iter(ks).__next__

    def lin(din, dout):
        w = jax.random.normal(nxt(), (din, dout), jnp.float32) * 0.05
        b = jax.random.normal(nxt(), (dout,), jnp.float32) * 0.01
        return w, b

    def bn(d):
        gamma = 1.0 + 0.1 * jax.random.normal(nxt(), (d,), jnp.float32)
        beta = 0.1 * jax.random.normal(nxt(), (d,), jnp.float32)
        mean = 0.1 * jax.random.normal(nxt(), (d,), jnp.float32)
        var = jnp.abs(jax.random.normal(nxt(), (d,), jnp.float32)) + 0.5
        return gamma, beta, mean, var

    p = {}
    p["w1"], p["b1"] = lin(H, W)
    p["bn1"] = bn(W)
    p["w2"], p["b2"] = lin(H + W, W)
    p["bn2"] = bn(W)
    p["w3"], p["b3"] = lin(H + W, W)
    p["bn3"] = bn(W)
    p["w4"], p["b4"] = lin(H + W, W)
    p["bn4"] = bn(W)
    p["wo"], p["bo"] = lin(4 * W, NUM_CLASSES)
    return p


def fold_bn(bias, bn, eps=1e-5):
    """(scale, shift) s.t. BN(z + bias) == z*scale + shift (eval mode)."""
    gamma, beta, mean, var = bn
    scale = gamma / jnp.sqrt(var + eps)
    shift = (bias - mean) * scale + beta
    return scale, shift


def prepare_params(params, half_in_size, layer_width):
    """ONE-TIME packing of all parameters into two slabs (hoisted out of the
    per-call forward path).  All sub-matrices sit in 128-lane-aligned bands.

    Padding invariant: wo lanes [NUM_CLASSES:C_PAD) and the fc_out-bias lanes
    [NUM_CLASSES:C_PAD) are zero, so kernel output lanes [NUM_CLASSES:) are 0.
    """
    H, W = half_in_size, layer_width
    lanes = max(4 * W, C_PAD)

    # affine slab (9, C_PAD): rows 0-3 BN scale, 4-7 BN shift, 8 fc_out bias.
    aff = jnp.zeros((9, C_PAD), jnp.float32)
    for k, (b, bn) in enumerate([(params["b1"], params["bn1"]),
                                 (params["b2"], params["bn2"]),
                                 (params["b3"], params["bn3"]),
                                 (params["b4"], params["bn4"])]):
        s, t = fold_bn(b, bn)
        aff = aff.at[k, :W].set(s)
        aff = aff.at[4 + k, :W].set(t)
    aff = aff.at[8, :NUM_CLASSES].set(params["bo"])

    # weight slab (2H + 7W, lanes) bf16.
    rows = 2 * H + 3 * W + 4 * W
    wslab = jnp.zeros((rows, lanes), jnp.float32)
    # x-side block (2H, 4W): column group k is layer-(k+1)'s x-part.
    wslab = wslab.at[0:H, 0:W].set(params["w1"])                 # z1  <- x[:, :H]
    wslab = wslab.at[H:2 * H, W:2 * W].set(params["w2"][:H])     # z2x <- x[:, H:2H]
    wslab = wslab.at[0:H, 2 * W:3 * W].set(params["w3"][:H])     # z3x <- x[:, :H]
    wslab = wslab.at[H:2 * H, 3 * W:4 * W].set(params["w4"][:H]) # z4x <- x[:, H:2H]
    # hidden (recurrent) parts: one (W, W) band each, lanes 0:W.
    for i, wh in enumerate([params["w2"][H:], params["w3"][H:], params["w4"][H:]]):
        r0 = 2 * H + i * W
        wslab = wslab.at[r0:r0 + W, 0:W].set(wh)
    # fc_out weight (4W, NUM_CLASSES) in its own 128-lane-aligned band.
    r0 = 2 * H + 3 * W
    wslab = wslab.at[r0:r0 + 4 * W, 0:NUM_CLASSES].set(params["wo"])

    return {"wslab": wslab.astype(jnp.bfloat16), "aff": aff}


# --------------------------------- wrapper -----------------------------------


def _pick_batch_tile(B):
    """Big M tiles are the only MXU-utilization lever (K, N are fixed & small).
    Keep >=2 grid steps when B allows so ("parallel",) shards the batch across
    both v7x TensorCores; cap at 512 rows (VMEM-safe on all generations)."""
    return min(512, max(8, pl.next_power_of_2(max(1, B // 2))))


def efficient_spinalnet_forward(x, prepped, half_in_size, layer_width,
                                *, padded_output=False):
    """SpinalNet head forward (eval mode).

    Returns (B, NUM_CLASSES) bf16 logits by default.  With padded_output=True
    returns the fused lane-dense (B_pad, C_PAD) bf16 buffer (logits in
    lanes [0, NUM_CLASSES), valid rows [0, B)) to avoid the extra HBM pass of
    the slice when a downstream consumer can take the padded layout directly.
    """
    H, W = half_in_size, layer_width
    B = x.shape[0]
    wslab, aff = prepped["wslab"], prepped["aff"]

    tb = _pick_batch_tile(B)
    grid_len = pl.cdiv(B, tb)
    B_pad = grid_len * tb

    # bf16 at the pallas_call boundary -> half the x read stream.
    xb = x.astype(jnp.bfloat16)
    if B_pad != B:
        xb = jnp.pad(xb, ((0, B_pad - B), (0, 0)))

    kernel = functools.partial(spinalnet_kernel, H, W)

    flops = 2 * B_pad * (2 * H * 4 * W + 3 * W * W + 4 * W * C_PAD)
    bytes_accessed = int(xb.size * 2 + wslab.size * 2 + aff.size * 4
                         + B_pad * C_PAD * 2)

    out = pl.pallas_call(
        kernel,
        out_shape=jax.ShapeDtypeStruct((B_pad, C_PAD), jnp.bfloat16),
        grid_spec=pltpu.PrefetchScalarGridSpec(
            num_scalar_prefetch=0,
            grid=(grid_len,),
            in_specs=[
                pl.BlockSpec((tb, 2 * H), lambda i: (i, 0)),        # stream x
                pl.BlockSpec(wslab.shape, lambda i: (0, 0)),        # pinned weights
                pl.BlockSpec(aff.shape, lambda i: (0, 0)),          # pinned affine
            ],
            out_specs=pl.BlockSpec((tb, C_PAD), lambda i: (i, 0)),  # lane-dense out
        ),
        compiler_params=pltpu.CompilerParams(
            dimension_semantics=("parallel",)),
        cost_estimate=pl.CostEstimate(
            flops=flops, transcendentals=0, bytes_accessed=bytes_accessed),
    )(xb, wslab, aff)

    if padded_output:
        return out
    return out[:B, :NUM_CLASSES]


# ------------------------------- references ----------------------------------


def reference_forward_f32(x, params, half_in_size):
    """Pure-f32 JAX reference mirroring the PyTorch forward (eval mode)."""
    H = half_in_size

    def layer(inp, w, b, bn, eps=1e-5):
        gamma, beta, mean, var = bn
        z = inp @ w + b
        z = (z - mean) / jnp.sqrt(var + eps) * gamma + beta
        return jnp.maximum(z, 0.0)

    x1 = layer(x[:, 0:H], params["w1"], params["b1"], params["bn1"])
    x2 = layer(jnp.concatenate([x[:, H:2 * H], x1], axis=1),
               params["w2"], params["b2"], params["bn2"])
    x3 = layer(jnp.concatenate([x[:, 0:H], x2], axis=1),
               params["w3"], params["b3"], params["bn3"])
    x4 = layer(jnp.concatenate([x[:, H:2 * H], x3], axis=1),
               params["w4"], params["b4"], params["bn4"])
    cat = jnp.concatenate([x1, x2, x3, x4], axis=1)
    return cat @ params["wo"] + params["bo"]


def reference_from_prepped(x, prepped, half_in_size, layer_width):
    """Mirror of the kernel math (same packed bf16 slabs, f32 accumulation)."""
    H, W = half_in_size, layer_width
    wslab, aff = prepped["wslab"], prepped["aff"]
    xb = x.astype(jnp.bfloat16)

    zx = jnp.dot(xb, wslab[0:2 * H, 0:4 * W], preferred_element_type=jnp.float32)

    def affine_relu(z, k):
        return jnp.maximum(z * aff[k:k + 1, 0:W] + aff[4 + k:5 + k, 0:W],
                           0.0).astype(jnp.bfloat16)

    def hidden_dot(xi, i):
        r0 = 2 * H + i * W
        return jnp.dot(xi, wslab[r0:r0 + W, 0:W],
                       preferred_element_type=jnp.float32)

    x1 = affine_relu(zx[:, 0:W], 0)
    x2 = affine_relu(zx[:, W:2 * W] + hidden_dot(x1, 0), 1)
    x3 = affine_relu(zx[:, 2 * W:3 * W] + hidden_dot(x2, 1), 2)
    x4 = affine_relu(zx[:, 3 * W:4 * W] + hidden_dot(x3, 2), 3)
    hcat = jnp.concatenate([x1, x2, x3, x4], axis=1)
    r0 = 2 * H + 3 * W
    logits = jnp.dot(hcat, wslab[r0:r0 + 4 * W, 0:C_PAD],
                     preferred_element_type=jnp.float32)
    return (logits + aff[8:9, :]).astype(jnp.bfloat16)[:, :NUM_CLASSES]


# ----------------------------------- main -------------------------------------


if __name__ == "__main__":
    B = 8
    half_in_size = 64
    layer_width = 32

    key = jax.random.PRNGKey(0)
    kx, kp = jax.random.split(key)
    x = jax.random.normal(kx, (B, 2 * half_in_size), jnp.float32)
    params = make_params(kp, half_in_size, layer_width)

    # one-time parameter packing (hoisted out of the forward path)
    prepped = prepare_params(params, half_in_size, layer_width)

    out = efficient_spinalnet_forward(x, prepped, half_in_size, layer_width)
    out = jax.block_until_ready(out)
    assert out.shape == (B, NUM_CLASSES)

    # tight check vs. a reference with identical packed-bf16 numerics
    ref_tight = reference_from_prepped(x, prepped, half_in_size, layer_width)
    assert jnp.allclose(out.astype(jnp.float32), ref_tight.astype(jnp.float32),
                        atol=5e-3, rtol=5e-3), "mismatch vs packed-bf16 ref"

    # loose sanity check vs. the pure-f32 reference (bf16 matmuls + bf16 output
    # => looser tolerance; acceptable for inference and documented here)
    ref_f32 = reference_forward_f32(x, params, half_in_size)
    assert jnp.allclose(out.astype(jnp.float32), ref_f32,
                        atol=6e-2, rtol=6e-2), "mismatch vs f32 ref"

    # NOTE: Dropout layers are identity in eval/inference mode (as implemented).
    print("KERNEL_OK")
</pallas_src>

<mosaic_0001>
module attributes {stable_mosaic.version = 11 : i64} {
  func.func @spinalnet_kernel(%arg0: i32, %arg1: memref<8x128xbf16, #tpu.memory_space<vmem>>, %arg2: memref<352x128xbf16, #tpu.memory_space<vmem>>, %arg3: memref<9x128xf32, #tpu.memory_space<vmem>>, %arg4: memref<8x128xbf16, #tpu.memory_space<vmem>>) attributes {dimension_semantics = [#tpu.dimension_semantics<parallel>], iteration_bounds = array<i64: 1>, scalar_prefetch = 0 : i64, scratch_operands = 0 : i64, tpu.core_type = #tpu.core_type<tc>, window_params = [{transform_indices = @transform_0, window_bounds = array<i64: 8, 128>}, {pipeline_mode = #tpu.pipeline_mode<synchronous>, transform_indices = @transform_1, window_bounds = array<i64: 352, 128>}, {pipeline_mode = #tpu.pipeline_mode<synchronous>, transform_indices = @transform_2, window_bounds = array<i64: 9, 128>}, {transform_indices = @transform_3, window_bounds = array<i64: 8, 128>}]} {
    %c0 = arith.constant 0 : index
    %c0_0 = arith.constant 0 : index
    %0 = vector.load %arg1[%c0, %c0_0] : memref<8x128xbf16, #tpu.memory_space<vmem>>, vector<8x128xbf16>
    %c0_1 = arith.constant 0 : index
    %c0_2 = arith.constant 0 : index
    %1 = vector.load %arg2[%c0_1, %c0_2] : memref<352x128xbf16, #tpu.memory_space<vmem>>, vector<128x128xbf16>
    %cst = arith.constant dense<0.000000e+00> : vector<8x128xf32>
    %2 = tpu.matmul %0, %1, %cst {dimension_numbers = #tpu.dot_dimension_numbers<[1], [0], [0], [1], [0, 0, 1, 1], [], []>} : vector<8x128xbf16>, vector<128x128xbf16>, vector<8x128xf32> -> vector<8x128xf32>
    %3 = vector.extract_strided_slice %2 {offsets = [0, 0], sizes = [8, 32], strides = [1, 1]} : vector<8x128xf32> to vector<8x32xf32>
    %c0_3 = arith.constant 0 : index
    %c0_4 = arith.constant 0 : index
    %4 = vector.load %arg3[%c0_3, %c0_4] : memref<9x128xf32, #tpu.memory_space<vmem>>, vector<1x32xf32>
    %c4 = arith.constant 4 : index
    %c0_5 = arith.constant 0 : index
    %5 = vector.load %arg3[%c4, %c0_5] : memref<9x128xf32, #tpu.memory_space<vmem>>, vector<1x32xf32>
    %6 = vector.broadcast %4 : vector<1x32xf32> to vector<8x32xf32>
    %7 = arith.mulf %3, %6 : vector<8x32xf32>
    %8 = vector.broadcast %5 : vector<1x32xf32> to vector<8x32xf32>
    %9 = arith.addf %7, %8 : vector<8x32xf32>
    %cst_6 = arith.constant 0.000000e+00 : f32
    %10 = vector.broadcast %cst_6 : f32 to vector<8x32xf32>
    %11 = arith.maximumf %9, %10 : vector<8x32xf32>
    %12 = arith.truncf %11 : vector<8x32xf32> to vector<8x32xbf16>
    %13 = vector.extract_strided_slice %2 {offsets = [0, 32], sizes = [8, 32], strides = [1, 1]} : vector<8x128xf32> to vector<8x32xf32>
    %c128 = arith.constant 128 : index
    %c0_7 = arith.constant 0 : index
    %14 = vector.load %arg2[%c128, %c0_7] : memref<352x128xbf16, #tpu.memory_space<vmem>>, vector<32x32xbf16>
    %cst_8 = arith.constant dense<0.000000e+00> : vector<8x32xf32>
    %15 = tpu.matmul %12, %14, %cst_8 {dimension_numbers = #tpu.dot_dimension_numbers<[1], [0], [0], [1], [0, 0, 1, 1], [], []>} : vector<8x32xbf16>, vector<32x32xbf16>, vector<8x32xf32> -> vector<8x32xf32>
    %16 = arith.addf %13, %15 : vector<8x32xf32>
    %c1 = arith.constant 1 : index
    %c0_9 = arith.constant 0 : index
    %17 = vector.load %arg3[%c1, %c0_9] : memref<9x128xf32, #tpu.memory_space<vmem>>, vector<1x32xf32>
    %c5 = arith.constant 5 : index
    %c0_10 = arith.constant 0 : index
    %18 = vector.load %arg3[%c5, %c0_10] : memref<9x128xf32, #tpu.memory_space<vmem>>, vector<1x32xf32>
    %19 = vector.broadcast %17 : vector<1x32xf32> to vector<8x32xf32>
    %20 = arith.mulf %16, %19 : vector<8x32xf32>
    %21 = vector.broadcast %18 : vector<1x32xf32> to vector<8x32xf32>
    %22 = arith.addf %20, %21 : vector<8x32xf32>
    %cst_11 = arith.constant 0.000000e+00 : f32
    %23 = vector.broadcast %cst_11 : f32 to vector<8x32xf32>
    %24 = arith.maximumf %22, %23 : vector<8x32xf32>
    %25 = arith.truncf %24 : vector<8x32xf32> to vector<8x32xbf16>
    %26 = vector.extract_strided_slice %2 {offsets = [0, 64], sizes = [8, 32], strides = [1, 1]} : vector<8x128xf32> to vector<8x32xf32>
    %c160 = arith.constant 160 : index
    %c0_12 = arith.constant 0 : index
    %27 = vector.load %arg2[%c160, %c0_12] : memref<352x128xbf16, #tpu.memory_space<vmem>>, vector<32x32xbf16>
    %cst_13 = arith.constant dense<0.000000e+00> : vector<8x32xf32>
    %28 = tpu.matmul %25, %27, %cst_13 {dimension_numbers = #tpu.dot_dimension_numbers<[1], [0], [0], [1], [0, 0, 1, 1], [], []>} : vector<8x32xbf16>, vector<32x32xbf16>, vector<8x32xf32> -> vector<8x32xf32>
    %29 = arith.addf %26, %28 : vector<8x32xf32>
    %c2 = arith.constant 2 : index
    %c0_14 = arith.constant 0 : index
    %30 = vector.load %arg3[%c2, %c0_14] : memref<9x128xf32, #tpu.memory_space<vmem>>, vector<1x32xf32>
    %c6 = arith.constant 6 : index
    %c0_15 = arith.constant 0 : index
    %31 = vector.load %arg3[%c6, %c0_15] : memref<9x128xf32, #tpu.memory_space<vmem>>, vector<1x32xf32>
    %32 = vector.broadcast %30 : vector<1x32xf32> to vector<8x32xf32>
    %33 = arith.mulf %29, %32 : vector<8x32xf32>
    %34 = vector.broadcast %31 : vector<1x32xf32> to vector<8x32xf32>
    %35 = arith.addf %33, %34 : vector<8x32xf32>
    %cst_16 = arith.constant 0.000000e+00 : f32
    %36 = vector.broadcast %cst_16 : f32 to vector<8x32xf32>
    %37 = arith.maximumf %35, %36 : vector<8x32xf32>
    %38 = arith.truncf %37 : vector<8x32xf32> to vector<8x32xbf16>
    %39 = vector.extract_strided_slice %2 {offsets = [0, 96], sizes = [8, 32], strides = [1, 1]} : vector<8x128xf32> to vector<8x32xf32>
    %c192 = arith.constant 192 : index
    %c0_17 = arith.constant 0 : index
    %40 = vector.load %arg2[%c192, %c0_17] : memref<352x128xbf16, #tpu.memory_space<vmem>>, vector<32x32xbf16>
    %cst_18 = arith.constant dense<0.000000e+00> : vector<8x32xf32>
    %41 = tpu.matmul %38, %40, %cst_18 {dimension_numbers = #tpu.dot_dimension_numbers<[1], [0], [0], [1], [0, 0, 1, 1], [], []>} : vector<8x32xbf16>, vector<32x32xbf16>, vector<8x32xf32> -> vector<8x32xf32>
    %42 = arith.addf %39, %41 : vector<8x32xf32>
    %c3 = arith.constant 3 : index
    %c0_19 = arith.constant 0 : index
    %43 = vector.load %arg3[%c3, %c0_19] : memref<9x128xf32, #tpu.memory_space<vmem>>, vector<1x32xf32>
    %c7 = arith.constant 7 : index
    %c0_20 = arith.constant 0 : index
    %44 = vector.load %arg3[%c7, %c0_20] : memref<9x128xf32, #tpu.memory_space<vmem>>, vector<1x32xf32>
    %45 = vector.broadcast %43 : vector<1x32xf32> to vector<8x32xf32>
    %46 = arith.mulf %42, %45 : vector<8x32xf32>
    %47 = vector.broadcast %44 : vector<1x32xf32> to vector<8x32xf32>
    %48 = arith.addf %46, %47 : vector<8x32xf32>
    %cst_21 = arith.constant 0.000000e+00 : f32
    %49 = vector.broadcast %cst_21 : f32 to vector<8x32xf32>
    %50 = arith.maximumf %48, %49 : vector<8x32xf32>
    %51 = arith.truncf %50 : vector<8x32xf32> to vector<8x32xbf16>
    %52 = tpu.concatenate %12, %25, %38, %51 in 1 : vector<8x32xbf16>, vector<8x32xbf16>, vector<8x32xbf16>, vector<8x32xbf16> -> vector<8x128xbf16>
    %c224 = arith.constant 224 : index
    %c0_22 = arith.constant 0 : index
    %53 = vector.load %arg2[%c224, %c0_22] : memref<352x128xbf16, #tpu.memory_space<vmem>>, vector<128x128xbf16>
    %cst_23 = arith.constant dense<0.000000e+00> : vector<8x128xf32>
    %54 = tpu.matmul %52, %53, %cst_23 {dimension_numbers = #tpu.dot_dimension_numbers<[1], [0], [0], [1], [0, 0, 1, 1], [], []>} : vector<8x128xbf16>, vector<128x128xbf16>, vector<8x128xf32> -> vector<8x128xf32>
    %c8 = arith.constant 8 : index
    %c0_24 = arith.constant 0 : index
    %55 = vector.load %arg3[%c8, %c0_24] : memref<9x128xf32, #tpu.memory_space<vmem>>, vector<1x128xf32>
    %56 = vector.broadcast %55 : vector<1x128xf32> to vector<8x128xf32>
    %57 = arith.addf %54, %56 : vector<8x128xf32>
    %58 = arith.truncf %57 : vector<8x128xf32> to vector<8x128xbf16>
    %c0_25 = arith.constant 0 : index
    %c0_26 = arith.constant 0 : index
    %59 = vector.load %arg4[%c0_25, %c0_26] : memref<8x128xbf16, #tpu.memory_space<vmem>>, vector<8x128xbf16>
    tpu.vector_store %arg4[%c0_25, %c0_26], %58 {strides = array<i32>} : memref<8x128xbf16, #tpu.memory_space<vmem>>, vector<8x128xbf16>,
    return
  }
  func.func @transform_0(%arg0: i32) -> (i32, i32) {
    %c0_i32 = arith.constant 0 : i32
    %c0_i32_0 = arith.constant 0 : i32
    return %arg0, %c0_i32 : i32, i32
  }
  func.func @transform_1(%arg0: i32) -> (i32, i32) {
    %c0_i32 = arith.constant 0 : i32
    %c0_i32_0 = arith.constant 0 : i32
    %c0_i32_1 = arith.constant 0 : i32
    return %c0_i32, %c0_i32_0 : i32, i32
  }
  func.func @transform_2(%arg0: i32) -> (i32, i32) {
    %c0_i32 = arith.constant 0 : i32
    %c0_i32_0 = arith.constant 0 : i32
    %c0_i32_1 = arith.constant 0 : i32
    return %c0_i32, %c0_i32_0 : i32, i32
  }
  func.func @transform_3(%arg0: i32) -> (i32, i32) {
    %c0_i32 = arith.constant 0 : i32
    %c0_i32_0 = arith.constant 0 : i32
    return %arg0, %c0_i32 : i32, i32
  }
}

</mosaic_0001>

<llo_original>
// kernel: tpu_custom_call.1
$region0: #{tpu_custom_call.1}
  #allocation0 [shape = 'u32[]', space=smem, size = 0x4, offset = 0x4, fixed_abs, tag = 'smem constant byte address 0x4 - core index']
  #allocation1 [shape = 'u32[72,128]{1,0:T(1,128)}', space=vmem, size = 0x9000, scoped, tag = 'internal scratch']
  %s0 = inlined_call_operand.hbm [shape: bf16[8,128], index: 0, kind: input, shape index: {}]
  %s1 = inlined_call_operand.hbm [shape: bf16[352,128], index: 1, kind: input, shape index: {}]
  %s2 = inlined_call_operand.hbm [shape: f32[9,128], index: 2, kind: input, shape index: {}]
  %s3 = inlined_call_operand.hbm [shape: bf16[8,128], index: 3, kind: output, shape index: {}]
  %s4 = sld [smem:[#allocation0]]
  $region34: #{tpu_custom_call.1} parent=0
    _
  %s6 = ssub.s32 1, %s4
  %s7 = scalar_select 0, %s6, %s4
  $region1: #{tpu_custom_call.1} parent=0
    #allocation2 [shape = 'u8[2048]{0}', space=vmem, size = 0x800, scoped, tag = 'input window, operand 0, single buffered']
    #allocation3 [shape = 's32[1]{0}', space=sflag, size = 0x4, scoped, tag = 'scoped memory for tpu_custom_call.1']
    #allocation4 [shape = 's32[1]{0}', space=sflag, size = 0x4, scoped, tag = 'scoped memory for tpu_custom_call.1']
    #allocation5 [shape = 'u8[90112]{0}', space=vmem, size = 0x16000, scoped, tag = 'input window, operand 1, single buffered']
    #allocation6 [shape = 's32[1]{0}', space=sflag, size = 0x4, scoped, tag = 'scoped memory for tpu_custom_call.1']
    #allocation7 [shape = 'u8[8192]{0}', space=vmem, size = 0x2000, scoped, tag = 'input window, operand 2, single buffered']
    #allocation8 [shape = 'u8[2048]{0}', space=vmem, size = 0x800, scoped, tag = 'output window, operand 0, single buffered']
    %8 = vsyncpa [#allocation3], 0
    %9 = vsyncpa [#allocation6], 0
    %10 = vsyncpa [#allocation4], 0
    // Predicated region
    $region2: #{tpu_custom_call.1} parent=1 // pred_check
      _
    $region3: #{tpu_custom_call.1} parent=1 // pred_check_branch
      %12 = sbr.rel (0) target = $region5
    $region4: #{tpu_custom_call.1} parent=1 // pred_region
      %14 = vsyncadd [#allocation3], 0
      %s16 = sshll.u32 %s0, 4
      %s17 = int_to_ptr.hbm [resolvable:$true] %s16
      %s18 = sshll.u32 [#allocation2], 4
      %s19 = int_to_ptr.vmem [resolvable:$true] %s18
      %21 = dma.hbm_to_vmem [thread:$0]  %s17, 64, %s19, [#allocation3]
    $region5: #{tpu_custom_call.1} parent=1 // pred_fallthru
      _
    // Predicated region
    $region6: #{tpu_custom_call.1} parent=1 // pred_check
      _
    $region7: #{tpu_custom_call.1} parent=1 // pred_check_branch
      %23 = sbr.rel (0) target = $region9
    $region8: #{tpu_custom_call.1} parent=1 // pred_region
      %25 = vsyncadd [#allocation6], 0
      %s26 = sshll.u32 %s1, 4
      %s27 = int_to_ptr.hbm [resolvable:$true] %s26
      %s28 = sshll.u32 [#allocation5], 4
      %s29 = int_to_ptr.vmem [resolvable:$true] %s28
      %34 = dma.hbm_to_vmem [thread:$0]  %s27, 2816, %s29, [#allocation6], 64, 64, 4
    $region9: #{tpu_custom_call.1} parent=1 // pred_fallthru
      _
    // Predicated region
    $region10: #{tpu_custom_call.1} parent=1 // pred_check
      _
    $region11: #{tpu_custom_call.1} parent=1 // pred_check_branch
      %36 = sbr.rel (0) target = $region13
    $region12: #{tpu_custom_call.1} parent=1 // pred_region
      %38 = vsyncadd [#allocation6], 0
      %s39 = sshll.u32 %s2, 4
      %s40 = int_to_ptr.hbm [resolvable:$true] %s39
      %s41 = sshll.u32 [#allocation7], 4
      %s42 = int_to_ptr.vmem [resolvable:$true] %s41
      %47 = dma.hbm_to_vmem [thread:$0]  %s40, 256, %s42, [#allocation6], 128, 128, 8
    $region13: #{tpu_custom_call.1} parent=1 // pred_fallthru
      _
    // Predicated region
    $region14: #{tpu_custom_call.1} parent=1 // pred_check
      _
    $region15: #{tpu_custom_call.1} parent=1 // pred_check_branch
      %49 = sbr.rel (0) target = $region17
    $region16: #{tpu_custom_call.1} parent=1 // pred_region
      %51 = dma.done [#allocation3], 64
    $region17: #{tpu_custom_call.1} parent=1 // pred_fallthru
      _
    // Predicated region
    $region18: #{tpu_custom_call.1} parent=1 // pred_check
      _
    $region19: #{tpu_custom_call.1} parent=1 // pred_check_branch
      %53 = sbr.rel (0) target = $region21
    $region20: #{tpu_custom_call.1} parent=1 // pred_region
      %55 = dma.done [#allocation6], 2816
    $region21: #{tpu_custom_call.1} parent=1 // pred_fallthru
      _
    // Predicated region
    $region22: #{tpu_custom_call.1} parent=1 // pred_check
      _
    $region23: #{tpu_custom_call.1} parent=1 // pred_check_branch
      %57 = sbr.rel (0) target = $region25
    $region24: #{tpu_custom_call.1} parent=1 // pred_region
      %59 = dma.done [#allocation6], 256
    $region25: #{tpu_custom_call.1} parent=1 // pred_fallthru
      _
    %v61 = vld [vmem:[#allocation2] sm:$0xf]
    %v62 = vld [vmem:[#allocation5] sm:$0xf]
    %v63 = vld [vmem:[#allocation5 + $0x4] sm:$0xf]
    %v64 = vld [vmem:[#allocation5 + $0x8] sm:$0xf]
    %v65 = vld [vmem:[#allocation5 + $0xc] sm:$0xf]
    %v66 = vld [vmem:[#allocation5 + $0x10] sm:$0xf]
    %v67 = vld [vmem:[#allocation5 + $0x14] sm:$0xf]
    %v68 = vld [vmem:[#allocation5 + $0x18] sm:$0xf]
    %v69 = vld [vmem:[#allocation5 + $0x1c] sm:$0xf]
    %v70 = vld [vmem:[#allocation5 + $0x20] sm:$0xf]
    %v71 = vld [vmem:[#allocation5 + $0x24] sm:$0xf]
    %v72 = vld [vmem:[#allocation5 + $0x28] sm:$0xf]
    %v73 = vld [vmem:[#allocation5 + $0x2c] sm:$0xf]
    %v74 = vld [vmem:[#allocation5 + $0x30] sm:$0xf]
    %v75 = vld [vmem:[#allocation5 + $0x34] sm:$0xf]
    %v76 = vld [vmem:[#allocation5 + $0x38] sm:$0xf]
    %v77 = vld [vmem:[#allocation5 + $0x3c] sm:$0xf]
    %v94 = vunpack.c.l.b16 %v62
    %v95 = vunpack.c.l.b16 %v63
    %v96 = vunpack.c.l.b16 %v64
    %v97 = vunpack.c.l.b16 %v65
    %v98 = vunpack.c.l.b16 %v66
    %v99 = vunpack.c.l.b16 %v67
    %v100 = vunpack.c.l.b16 %v68
    %v101 = vunpack.c.l.b16 %v69
    %v102 = vunpack.c.l.b16 %v70
    %v103 = vunpack.c.l.b16 %v71
    %v104 = vunpack.c.l.b16 %v72
    %v105 = vunpack.c.l.b16 %v73
    %v106 = vunpack.c.l.b16 %v74
    %v107 = vunpack.c.l.b16 %v75
    %v108 = vunpack.c.l.b16 %v76
    %v109 = vunpack.c.l.b16 %v77
    %v110 = vpack.c.b16 %v95, %v94
    %v111 = vpack.c.b16 %v97, %v96
    %v112 = vpack.c.b16 %v99, %v98
    %v113 = vpack.c.b16 %v101, %v100
    %v114 = vpack.c.b16 %v103, %v102
    %v115 = vpack.c.b16 %v105, %v104
    %v116 = vpack.c.b16 %v107, %v106
    %v117 = vpack.c.b16 %v109, %v108
    %126 = vmatpush.bf16.msra.mxu0 %v117
    %127 = vmatpush.bf16.msra.mxu0 %v116
    %128 = vmatpush.bf16.msra.mxu0 %v115
    %129 = vmatpush.bf16.msra.mxu0 %v114
    %130 = vmatpush.bf16.msra.mxu0 %v113
    %131 = vmatpush.bf16.msra.mxu0 %v112
    %132 = vmatpush.bf16.msra.mxu0 %v111
    %133 = vmatpush.bf16.msra.mxu0 %v110
    %134 = vmatmul.bf16.gmra.mxu0 %v61
    %v135 = vpop.f32.mrf.mxu0
    %v136 = vadd.f32 0.0, %v135
    %v137 = vpop.f32.mrf.mxu0
    %138 = vdwg.mxu0
    %v139 = vld [vmem:[#allocation7] sm:$0x1]
    %v140 = vld [vmem:[#allocation7 + $0x4] sm:$0x1]
    %v141 = vperm.slane %v139, 0
    %v142 = vmul.f32 %v136, %v141
    %v143 = vperm.slane %v140, 0
    %v144 = vadd.f32 %v142, %v143
    %v145 = vmax.f32 %v144, 0.0
    %v146 = vpack.c.bf16 %v145, %v145
    %v147 = vld [vmem:[#allocation5 + $0x40] sm:$0xf]
    %v148 = vld [vmem:[#allocation5 + $0x44] sm:$0xf]
    %v149 = vld [vmem:[#allocation5 + $0x48] sm:$0xf]
    %v150 = vld [vmem:[#allocation5 + $0x4c] sm:$0xf]
    %v155 = vunpack.c.l.b16 %v147
    %v156 = vunpack.c.l.b16 %v148
    %v157 = vunpack.c.l.b16 %v149
    %v158 = vunpack.c.l.b16 %v150
    %v159 = vpack.c.b16 %v156, %v155
    %v160 = vpack.c.b16 %v158, %v157
    %vm163 = vcmask 261120
    %v165 = vsel %vm163, %v146, 0
    %167 = vmatpush.bf16.msra.mxu0 0
    %168 = vmatpush.bf16.msra.mxu0 0
    %169 = vmatpush.bf16.msra.mxu0 0
    %170 = vmatpush.bf16.msra.mxu0 0
    %171 = vmatpush.bf16.msra.mxu0 0
    %172 = vmatpush.bf16.msra.mxu0 0
    %173 = vmatpush.bf16.msra.mxu0 %v160
    %174 = vmatpush.bf16.msra.mxu0 %v159
    %175 = vmatmul.bf16.gmra.mxu0 %v165
    %v176 = vpop.f32.mrf.mxu0
    %v177 = vadd.f32 0.0, %v176
    %v178 = vpop.f32.mrf.mxu0
    %179 = vdwg.mxu0
    %181 = vrot.lane.b32.xlu0 %v177, 32
    %v182 = vpop.permute.xlu0 %181
    %v184 = vadd.f32 %v136, %v182
    %v185 = vld [vmem:[#allocation7 + $0x1] sm:$0x1]
    %v186 = vld [vmem:[#allocation7 + $0x5] sm:$0x1]
    %v187 = vperm.slane %v185, 0
    %189 = vrot.lane.b32.xlu0 %v187, 32
    %v190 = vpop.permute.xlu0 %189
    %v192 = vmul.f32 %v184, %v190
    %v193 = vperm.slane %v186, 0
    %195 = vrot.lane.b32.xlu0 %v193, 32
    %v196 = vpop.permute.xlu0 %195
    %v198 = vadd.f32 %v192, %v196
    %v199 = vmax.f32 %v198, 0.0
    %v200 = vpack.c.bf16 %v199, %v199
    %v201 = vld [vmem:[#allocation5 + $0x50] sm:$0xf]
    %v202 = vld [vmem:[#allocation5 + $0x54] sm:$0xf]
    %v203 = vld [vmem:[#allocation5 + $0x58] sm:$0xf]
    %v204 = vld [vmem:[#allocation5 + $0x5c] sm:$0xf]
    %v206 = vunpack.c.l.b16 %v200
    %v207 = vpack.c.b16 %v206, %v206
    %208 = vrot.lane.b32.xlu0 %v207, 96
    %v209 = vpop.permute.xlu0 %208
    %v214 = vunpack.c.l.b16 %v201
    %v215 = vunpack.c.l.b16 %v202
    %v216 = vunpack.c.l.b16 %v203
    %v217 = vunpack.c.l.b16 %v204
    %v218 = vpack.c.b16 %v215, %v214
    %v219 = vpack.c.b16 %v217, %v216
    %v223 = vsel %vm163, %v209, 0
    %225 = vmatpush.bf16.msra.mxu0 0
    %226 = vmatpush.bf16.msra.mxu0 0
    %227 = vmatpush.bf16.msra.mxu0 0
    %228 = vmatpush.bf16.msra.mxu0 0
    %229 = vmatpush.bf16.msra.mxu0 0
    %230 = vmatpush.bf16.msra.mxu0 0
    %231 = vmatpush.bf16.msra.mxu0 %v219
    %232 = vmatpush.bf16.msra.mxu0 %v218
    %233 = vmatmul.bf16.gmra.mxu0 %v223
    %v234 = vpop.f32.mrf.mxu0
    %v235 = vadd.f32 0.0, %v234
    %v236 = vpop.f32.mrf.mxu0
    %237 = vdwg.mxu0
    %239 = vrot.lane.b32.xlu0 %v235, 64
    %v240 = vpop.permute.xlu0 %239
    %v242 = vadd.f32 %v136, %v240
    %v243 = vld [vmem:[#allocation7 + $0x2] sm:$0x1]
    %v244 = vld [vmem:[#allocation7 + $0x6] sm:$0x1]
    %v245 = vperm.slane %v243, 0
    %247 = vrot.lane.b32.xlu0 %v245, 64
    %v248 = vpop.permute.xlu0 %247
    %v250 = vmul.f32 %v242, %v248
    %v251 = vperm.slane %v244, 0
    %253 = vrot.lane.b32.xlu0 %v251, 64
    %v254 = vpop.permute.xlu0 %253
    %v256 = vadd.f32 %v250, %v254
    %v257 = vmax.f32 %v256, 0.0
    %v258 = vpack.c.bf16 %v257, %v257
    %v259 = vld [vmem:[#allocation5 + $0x60] sm:$0xf]
    %v260 = vld [vmem:[#allocation5 + $0x64] sm:$0xf]
    %v261 = vld [vmem:[#allocation5 + $0x68] sm:$0xf]
    %v262 = vld [vmem:[#allocation5 + $0x6c] sm:$0xf]
    %v264 = vunpack.c.l.b16 %v258
    %v265 = vpack.c.b16 %v264, %v264
    %266 = vrot.lane.b32.xlu0 %v265, 64
    %v267 = vpop.permute.xlu0 %266
    %v272 = vunpack.c.l.b16 %v259
    %v273 = vunpack.c.l.b16 %v260
    %v274 = vunpack.c.l.b16 %v261
    %v275 = vunpack.c.l.b16 %v262
    %v276 = vpack.c.b16 %v273, %v272
    %v277 = vpack.c.b16 %v275, %v274
    %v281 = vsel %vm163, %v267, 0
    %283 = vmatpush.bf16.msra.mxu0 0
    %284 = vmatpush.bf16.msra.mxu0 0
    %285 = vmatpush.bf16.msra.mxu0 0
    %286 = vmatpush.bf16.msra.mxu0 0
    %287 = vmatpush.bf16.msra.mxu0 0
    %288 = vmatpush.bf16.msra.mxu0 0
    %289 = vmatpush.bf16.msra.mxu0 %v277
    %290 = vmatpush.bf16.msra.mxu0 %v276
    %291 = vmatmul.bf16.gmra.mxu0 %v281
    %v292 = vpop.f32.mrf.mxu0
    %v293 = vadd.f32 0.0, %v292
    %v294 = vpop.f32.mrf.mxu0
    %295 = vdwg.mxu0
    %297 = vrot.lane.b32.xlu0 %v293, 96
    %v298 = vpop.permute.xlu0 %297
    %v300 = vadd.f32 %v136, %v298
    %v301 = vld [vmem:[#allocation7 + $0x3] sm:$0x1]
    %v302 = vld [vmem:[#allocation7 + $0x7] sm:$0x1]
    %v303 = vperm.slane %v301, 0
    %305 = vrot.lane.b32.xlu0 %v303, 96
    %v306 = vpop.permute.xlu0 %305
    %v308 = vmul.f32 %v300, %v306
    %v309 = vperm.slane %v302, 0
    %311 = vrot.lane.b32.xlu0 %v309, 96
    %v312 = vpop.permute.xlu0 %311
    %v314 = vadd.f32 %v308, %v312
    %v315 = vmax.f32 %v314, 0.0
    %v316 = vpack.c.bf16 %v315, %v315
    %v318 = vsel %vm163, %v146, %v200
    %vm319 = vcmask 523264
    %v321 = vsel %vm319, %v318, %v258
    %vm322 = vcmask 785408
    %v324 = vsel %vm322, %v321, %v316
    %v326 = vld [vmem:[#allocation5 + $0x70] sm:$0xf]
    %v327 = vld [vmem:[#allocation5 + $0x74] sm:$0xf]
    %v328 = vld [vmem:[#allocation5 + $0x78] sm:$0xf]
    %v329 = vld [vmem:[#allocation5 + $0x7c] sm:$0xf]
    %v330 = vld [vmem:[#allocation5 + $0x80] sm:$0xf]
    %v331 = vld [vmem:[#allocation5 + $0x84] sm:$0xf]
    %v332 = vld [vmem:[#allocation5 + $0x88] sm:$0xf]
    %v333 = vld [vmem:[#allocation5 + $0x8c] sm:$0xf]
    %v334 = vld [vmem:[#allocation5 + $0x90] sm:$0xf]
    %v335 = vld [vmem:[#allocation5 + $0x94] sm:$0xf]
    %v336 = vld [vmem:[#allocation5 + $0x98] sm:$0xf]
    %v337 = vld [vmem:[#allocation5 + $0x9c] sm:$0xf]
    %v338 = vld [vmem:[#allocation5 + $0xa0] sm:$0xf]
    %v339 = vld [vmem:[#allocation5 + $0xa4] sm:$0xf]
    %v340 = vld [vmem:[#allocation5 + $0xa8] sm:$0xf]
    %v341 = vld [vmem:[#allocation5 + $0xac] sm:$0xf]
    %v342 = vld [vmem:[#allocation7 + $0x8] sm:$0x1]
    %v343 = vperm.slane %v342, 0
    %v360 = vunpack.c.l.b16 %v326
    %v361 = vunpack.c.l.b16 %v327
    %v362 = vunpack.c.l.b16 %v328
    %v363 = vunpack.c.l.b16 %v329
    %v364 = vunpack.c.l.b16 %v330
    %v365 = vunpack.c.l.b16 %v331
    %v366 = vunpack.c.l.b16 %v332
    %v367 = vunpack.c.l.b16 %v333
    %v368 = vunpack.c.l.b16 %v334
    %v369 = vunpack.c.l.b16 %v335
    %v370 = vunpack.c.l.b16 %v336
    %v371 = vunpack.c.l.b16 %v337
    %v372 = vunpack.c.l.b16 %v338
    %v373 = vunpack.c.l.b16 %v339
    %v374 = vunpack.c.l.b16 %v340
    %v375 = vunpack.c.l.b16 %v341
    %v376 = vpack.c.b16 %v361, %v360
    %v377 = vpack.c.b16 %v363, %v362
    %v378 = vpack.c.b16 %v365, %v364
    %v379 = vpack.c.b16 %v367, %v366
    %v380 = vpack.c.b16 %v369, %v368
    %v381 = vpack.c.b16 %v371, %v370
    %v382 = vpack.c.b16 %v373, %v372
    %v383 = vpack.c.b16 %v375, %v374
    %392 = vmatpush.bf16.msra.mxu0 %v383
    %393 = vmatpush.bf16.msra.mxu0 %v382
    %394 = vmatpush.bf16.msra.mxu0 %v381
    %395 = vmatpush.bf16.msra.mxu0 %v380
    %396 = vmatpush.bf16.msra.mxu0 %v379
    %397 = vmatpush.bf16.msra.mxu0 %v378
    %398 = vmatpush.bf16.msra.mxu0 %v377
    %399 = vmatpush.bf16.msra.mxu0 %v376
    %400 = vmatmul.bf16.gmra.mxu0 %v324
    %v401 = vpop.f32.mrf.mxu0
    %v402 = vadd.f32 %v343, %v401
    %v403 = vpop.f32.mrf.mxu0
    %404 = vdwg.mxu0
    %v405 = vpack.c.bf16 %v402, %v402
    %406 = vst [vmem:[#allocation8] sm:$0xf] %v405
    // Predicated region
    $region26: #{tpu_custom_call.1} parent=1 // pred_check
      _
    $region27: #{tpu_custom_call.1} parent=1 // pred_check_branch
      %408 = sbr.rel (0) target = $region29
    $region28: #{tpu_custom_call.1} parent=1 // pred_region
      %410 = vsyncadd [#allocation4], 0
      %s412 = sshll.u32 [#allocation8], 4
      %s413 = int_to_ptr.vmem [resolvable:$true] %s412
      %s414 = sshll.u32 %s3, 4
      %s415 = int_to_ptr.hbm [resolvable:$true] %s414
      %417 = dma.vmem_to_hbm [thread:$0]  %s413, 64, %s415, [#allocation4]
    $region29: #{tpu_custom_call.1} parent=1 // pred_fallthru
      _
    // Predicated region
    $region30: #{tpu_custom_call.1} parent=1 // pred_check
      _
    $region31: #{tpu_custom_call.1} parent=1 // pred_check_branch
      %419 = sbr.rel (0) target = $region33
    $region32: #{tpu_custom_call.1} parent=1 // pred_region
      %421 = dma.done [#allocation4], 64
    $region33: #{tpu_custom_call.1} parent=1 // pred_fallthru
      _
    %422 = vsyncpa [#allocation3], 1
    %423 = vsyncpa [#allocation6], 1
    %424 = vsyncpa [#allocation4], 1

</llo_original>
